<compile_context>
chip_gen: v7x
topology: tpu7x:2x2x1
jax: 0.10.0
libtpu: 0.0.40
codegen_flags: <defaults>
</compile_context>

<pallas_src>
import functools

import jax
import jax.numpy as jnp
from jax import lax
from jax.experimental import pallas as pl
from jax.experimental.pallas import tpu as pltpu


def _round_up(x, m):
    return ((x + m - 1) // m) * m


def _intermediate_kernel(x_ref, w_ref, b_ref, o_ref, *, cast_bf16):
    # x_ref: (tm, K), w_ref: (tn, K) [native nn.Linear layout], b_ref: (1, tn),
    # o_ref: (tm, tn).
    x = x_ref[...]
    w = w_ref[...]
    if cast_bf16:
        x = x.astype(jnp.bfloat16)
        w = w.astype(jnp.bfloat16)
    # x @ w.T on the MXU with f32 accumulation; no transpose materialized.
    y = lax.dot_general(x, w, dimension_numbers=(((1,), (1,)), ((), ())),
                        preferred_element_type=jnp.float32)
    y = y + b_ref[...].astype(jnp.float32)

    # mish(y) = y * tanh(softplus(y)); single-exp rewrite:
    #   u = exp(-|y|)
    #   y >= 0: tanh(softplus(y)) = (1 + 2u) / (1 + 2u + 2u^2)
    #   y <  0: tanh(softplus(y)) = (u^2 + 2u) / (u^2 + 2u + 2)
    u = jnp.exp(-jnp.abs(y))
    u2 = u * u
    two_u = 2.0 * u
    pos = y >= 0.0
    num = jnp.where(pos, 1.0 + two_u, u2 + two_u)
    den = jnp.where(pos, 1.0 + two_u + 2.0 * u2, u2 + two_u + 2.0)
    o_ref[...] = (y * num * pl.reciprocal(den, approx=False)).astype(o_ref.dtype)


def _vmem_capacity_bytes():
    try:
        return int(pltpu.get_tpu_info().vmem_capacity_bytes)
    except Exception:
        return 64 * 1024 * 1024   # conservative default (v7x per-TC VMEM)


def _tile_vmem_bytes(tm, tn, K, in_isz, w_isz, out_isz):
    # Double-buffered x / W / bias / out tiles plus the f32 matmul result and
    # epilogue temporaries that live alongside them.
    return (2 * tm * K * in_isz          # x tile (double-buffered)
            + 2 * tn * K * w_isz         # weight slab
            + 2 * tn * 4                 # bias
            + 2 * tm * tn * out_isz      # output tile
            + 3 * tm * tn * 4)           # f32 accumulator + epilogue temps


def _select_tiles(M_pad8, N_pad, K, in_isz, w_isz, out_isz, budget, tm_target):
    def fits(tm, tn):
        return _tile_vmem_bytes(tm, tn, K, in_isz, w_isz, out_isz) <= budget

    tm_cands = []
    for t in (tm_target, 512, 384, 256, 128, 64, 32, 16, 8):
        t = min(t, M_pad8)
        if t > 0 and t % 8 == 0 and t not in tm_cands:
            tm_cands.append(t)

    # Preference 1: whole intermediate dim resident (weight fetched once) with the
    # largest row tile that fits.  Don't shrink rows below 256 just for residency.
    for tm in tm_cands:
        if fits(tm, N_pad):
            return tm, N_pad
        if tm <= 256:
            break

    # Preference 2: tile the intermediate dim (multiples of 128 dividing N_pad).
    for tm in tm_cands:
        for tn in range(N_pad, 127, -128):
            if N_pad % tn:
                continue
            if fits(tm, tn):
                return tm, tn
    return 8, 128   # degenerate fallback


def _refine_row_tile(M_pad8, tm_eff):
    # Avoid a host-side pad of x when a nearby multiple-of-8 divisor of the row
    # count exists (only ever shrinks the tile, so the VMEM fit is preserved).
    if M_pad8 % tm_eff == 0:
        return tm_eff
    for t in range(tm_eff - 8, max(8, tm_eff // 2) - 1, -8):
        if M_pad8 % t == 0:
            return t
    return tm_eff


def bert_intermediate(hidden_states, w, b, *, tm=512, use_bf16_matmul=False):
    """hidden_states: (..., H_in); w: (intermediate, H_in) = torch nn.Linear.weight;
    b: (intermediate,). Returns mish(hidden_states @ w.T + b)."""
    *lead, K = hidden_states.shape
    N = w.shape[0]
    x2d = hidden_states.reshape(-1, K)
    M = x2d.shape[0]

    in_isz = jnp.dtype(hidden_states.dtype).itemsize
    w_isz = jnp.dtype(w.dtype).itemsize
    out_isz = in_isz

    vmem_cap = _vmem_capacity_bytes()
    budget = vmem_cap - max(vmem_cap // 4, 12 * 1024 * 1024)   # tile-selection budget
    vmem_limit = vmem_cap - max(vmem_cap // 8, 8 * 1024 * 1024)  # compiler scoped limit

    M_pad8 = _round_up(M, 8)
    N_pad = _round_up(N, 128)

    tm_eff, tn_eff = _select_tiles(M_pad8, N_pad, K, in_isz, w_isz, out_isz,
                                   budget, tm)
    tm_eff = _refine_row_tile(M_pad8, tm_eff)
    M_pad = _round_up(M_pad8, tm_eff)

    if M_pad != M:
        # TODO(synk): mask the ragged tail block in-kernel instead of padding x.
        x2d = jnp.pad(x2d, ((0, M_pad - M), (0, 0)))
    w2d = w                      # native (intermediate, hidden) layout — no transpose
    b2d = b.reshape(1, N)
    if N_pad != N:
        w2d = jnp.pad(w2d, ((0, N_pad - N), (0, 0)))
        b2d = jnp.pad(b2d, ((0, 0), (0, N_pad - N)))

    m_tiles = M_pad // tm_eff
    n_tiles = N_pad // tn_eff

    kernel = functools.partial(_intermediate_kernel, cast_bf16=use_bf16_matmul)

    if n_tiles == 1:
        # Weight fully resident: 1-D parallel grid over row tiles; the weight and
        # bias block indices never change, so they are DMA'd exactly once.
        grid = (m_tiles,)
        in_specs = [
            pl.BlockSpec((tm_eff, K), lambda i: (i, 0)),     # x row tile
            pl.BlockSpec((tn_eff, K), lambda i: (0, 0)),     # resident weight
            pl.BlockSpec((1, tn_eff), lambda i: (0, 0)),     # resident bias
        ]
        out_spec = pl.BlockSpec((tm_eff, tn_eff), lambda i: (i, 0))
        dims = ("parallel",)
    else:
        # Weight tiled along N: row axis innermost so the weight block index is
        # unchanged across consecutive steps (Pallas skips the re-DMA).
        grid = (n_tiles, m_tiles)
        in_specs = [
            pl.BlockSpec((tm_eff, K), lambda j, i: (i, 0)),
            pl.BlockSpec((tn_eff, K), lambda j, i: (j, 0)),
            pl.BlockSpec((1, tn_eff), lambda j, i: (0, j)),
        ]
        out_spec = pl.BlockSpec((tm_eff, tn_eff), lambda j, i: (i, j))
        dims = ("parallel", "parallel")

    out2d = pl.pallas_call(
        kernel,
        out_shape=jax.ShapeDtypeStruct((M_pad, N_pad), hidden_states.dtype),
        grid_spec=pltpu.PrefetchScalarGridSpec(
            num_scalar_prefetch=0,
            grid=grid,
            in_specs=in_specs,
            out_specs=out_spec,
        ),
        compiler_params=pltpu.CompilerParams(
            dimension_semantics=dims,
            vmem_limit_bytes=int(vmem_limit),
        ),
    )(x2d, w2d, b2d)

    out2d = out2d[:M, :N]
    return out2d.reshape(*lead, N)


if __name__ == "__main__":
    # Small config consistent with BertIntermediate:
    # hidden_size=32, intermediate_size=4*32=128, hidden_act='mish'.
    B, S, H, I = 2, 8, 32, 128
    key = jax.random.PRNGKey(0)
    kx, kw, kb = jax.random.split(key, 3)

    x = jax.random.normal(kx, (B, S, H), dtype=jnp.float32)
    w = jax.random.normal(kw, (I, H), dtype=jnp.float32) * 0.02   # nn.Linear.weight (out, in)
    b = jax.random.normal(kb, (I,), dtype=jnp.float32) * 0.02     # nn.Linear.bias

    out = bert_intermediate(x, w, b)
    jax.block_until_ready(out)

    # Pure-JAX reference: dense + mish.
    y = x @ w.T + b
    ref = y * jnp.tanh(jax.nn.softplus(y))
    assert out.shape == ref.shape
    assert jnp.allclose(out, ref, atol=1e-4, rtol=1e-4), "mismatch vs reference"

    print("KERNEL_OK")
</pallas_src>

<mosaic_0001>
module attributes {stable_mosaic.version = 11 : i64} {
  func.func @_intermediate_kernel(%arg0: i32, %arg1: memref<16x32xf32, #tpu.memory_space<vmem>>, %arg2: memref<128x32xf32, #tpu.memory_space<vmem>>, %arg3: memref<1x128xf32, #tpu.memory_space<vmem>>, %arg4: memref<16x128xf32, #tpu.memory_space<vmem>>) attributes {dimension_semantics = [#tpu.dimension_semantics<parallel>], iteration_bounds = array<i64: 1>, scalar_prefetch = 0 : i64, scratch_operands = 0 : i64, tpu.core_type = #tpu.core_type<tc>, window_params = [{transform_indices = @transform_0, window_bounds = array<i64: 16, 32>}, {pipeline_mode = #tpu.pipeline_mode<synchronous>, transform_indices = @transform_1, window_bounds = array<i64: 128, 32>}, {pipeline_mode = #tpu.pipeline_mode<synchronous>, transform_indices = @transform_2, window_bounds = array<i64: 1, 128>}, {transform_indices = @transform_3, window_bounds = array<i64: 16, 128>}]} {
    %c0 = arith.constant 0 : index
    %c0_0 = arith.constant 0 : index
    %0 = vector.load %arg1[%c0, %c0_0] : memref<16x32xf32, #tpu.memory_space<vmem>>, vector<16x32xf32>
    %c0_1 = arith.constant 0 : index
    %c0_2 = arith.constant 0 : index
    %1 = vector.load %arg2[%c0_1, %c0_2] : memref<128x32xf32, #tpu.memory_space<vmem>>, vector<128x32xf32>
    %cst = arith.constant dense<0.000000e+00> : vector<16x128xf32>
    %2 = tpu.matmul %0, %1, %cst {dimension_numbers = #tpu.dot_dimension_numbers<[1], [1], [0], [0], [0, 0, 1, 0], [], []>} : vector<16x32xf32>, vector<128x32xf32>, vector<16x128xf32> -> vector<16x128xf32>
    %c0_3 = arith.constant 0 : index
    %c0_4 = arith.constant 0 : index
    %3 = vector.load %arg3[%c0_3, %c0_4] : memref<1x128xf32, #tpu.memory_space<vmem>>, vector<1x128xf32>
    %4 = vector.broadcast %3 : vector<1x128xf32> to vector<16x128xf32>
    %5 = arith.addf %2, %4 : vector<16x128xf32>
    %6 = math.absf %5 : vector<16x128xf32>
    %cst_5 = arith.constant 0.000000e+00 : f32
    %7 = vector.broadcast %cst_5 : f32 to vector<16x128xf32>
    %8 = arith.subf %7, %6 : vector<16x128xf32>
    %9 = math.exp %8 : vector<16x128xf32>
    %10 = arith.mulf %9, %9 : vector<16x128xf32>
    %cst_6 = arith.constant 2.000000e+00 : f32
    %11 = vector.broadcast %cst_6 : f32 to vector<16x128xf32>
    %12 = arith.mulf %11, %9 : vector<16x128xf32>
    %cst_7 = arith.constant 0.000000e+00 : f32
    %13 = vector.broadcast %cst_7 : f32 to vector<16x128xf32>
    %14 = arith.cmpf oge, %5, %13 : vector<16x128xf32>
    %cst_8 = arith.constant 1.000000e+00 : f32
    %15 = vector.broadcast %cst_8 : f32 to vector<16x128xf32>
    %16 = arith.addf %15, %12 : vector<16x128xf32>
    %17 = arith.addf %10, %12 : vector<16x128xf32>
    %18 = arith.select %14, %16, %17 : vector<16x128xi1>, vector<16x128xf32>
    %cst_9 = arith.constant 1.000000e+00 : f32
    %19 = vector.broadcast %cst_9 : f32 to vector<16x128xf32>
    %20 = arith.addf %19, %12 : vector<16x128xf32>
    %cst_10 = arith.constant 2.000000e+00 : f32
    %21 = vector.broadcast %cst_10 : f32 to vector<16x128xf32>
    %22 = arith.mulf %21, %10 : vector<16x128xf32>
    %23 = arith.addf %20, %22 : vector<16x128xf32>
    %24 = arith.addf %10, %12 : vector<16x128xf32>
    %cst_11 = arith.constant 2.000000e+00 : f32
    %25 = vector.broadcast %cst_11 : f32 to vector<16x128xf32>
    %26 = arith.addf %24, %25 : vector<16x128xf32>
    %27 = arith.select %14, %23, %26 : vector<16x128xi1>, vector<16x128xf32>
    %28 = arith.mulf %5, %18 : vector<16x128xf32>
    %29 = tpu.reciprocal %27 : vector<16x128xf32> -> vector<16x128xf32>
    %30 = arith.mulf %28, %29 : vector<16x128xf32>
    %c0_12 = arith.constant 0 : index
    %c0_13 = arith.constant 0 : index
    %31 = vector.load %arg4[%c0_12, %c0_13] : memref<16x128xf32, #tpu.memory_space<vmem>>, vector<16x128xf32>
    tpu.vector_store %arg4[%c0_12, %c0_13], %30 {strides = array<i32>} : memref<16x128xf32, #tpu.memory_space<vmem>>, vector<16x128xf32>,
    return
  }
  func.func @transform_0(%arg0: i32) -> (i32, i32) {
    %c0_i32 = arith.constant 0 : i32
    %c0_i32_0 = arith.constant 0 : i32
    return %arg0, %c0_i32 : i32, i32
  }
  func.func @transform_1(%arg0: i32) -> (i32, i32) {
    %c0_i32 = arith.constant 0 : i32
    %c0_i32_0 = arith.constant 0 : i32
    %c0_i32_1 = arith.constant 0 : i32
    return %c0_i32, %c0_i32_0 : i32, i32
  }
  func.func @transform_2(%arg0: i32) -> (i32, i32) {
    %c0_i32 = arith.constant 0 : i32
    %c0_i32_0 = arith.constant 0 : i32
    %c0_i32_1 = arith.constant 0 : i32
    return %c0_i32, %c0_i32_0 : i32, i32
  }
  func.func @transform_3(%arg0: i32) -> (i32, i32) {
    %c0_i32 = arith.constant 0 : i32
    %c0_i32_0 = arith.constant 0 : i32
    return %arg0, %c0_i32 : i32, i32
  }
}

</mosaic_0001>

<llo_original>
// kernel: tpu_custom_call.1
$region0: #{tpu_custom_call.1}
  #allocation0 [shape = 'u32[]', space=smem, size = 0x4, offset = 0x4, fixed_abs, tag = 'smem constant byte address 0x4 - core index']
  #allocation1 [shape = 'u32[144,128]{1,0:T(1,128)}', space=vmem, size = 0x12000, scoped, tag = 'internal scratch']
  %s0 = inlined_call_operand.vmem [shape: f32[16,32], index: 0, kind: input, shape index: {}]
  %s1 = inlined_call_operand.vmem [shape: f32[128,32], index: 1, kind: input, shape index: {}]
  %s2 = inlined_call_operand.vmem [shape: f32[1,128], index: 2, kind: input, shape index: {}]
  %s3 = inlined_call_operand.hbm [shape: f32[16,128], index: 3, kind: output, shape index: {}]
  %s4 = sld [smem:[#allocation0]]
  $region22: #{tpu_custom_call.1} parent=0
    _
  %s6 = ssub.s32 1, %s4
  %s7 = scalar_select 0, %s6, %s4
  $region1: #{tpu_custom_call.1} parent=0
    #allocation2 [shape = 'u8[8192]{0}', space=vmem, size = 0x2000, scoped, tag = 'output window, operand 0, single buffered']
    #allocation3 [shape = 's32[1]{0}', space=sflag, size = 0x4, scoped, tag = 'scoped memory for tpu_custom_call.1']
    %8 = vsyncpa [#allocation3], 0
    // Predicated region
    $region2: #{tpu_custom_call.1} parent=1 // pred_check
      _
    $region3: #{tpu_custom_call.1} parent=1 // pred_check_branch
      %10 = sbr.rel (0) target = $region5
    $region4: #{tpu_custom_call.1} parent=1 // pred_region
      _
    $region5: #{tpu_custom_call.1} parent=1 // pred_fallthru
      _
    // Predicated region
    $region6: #{tpu_custom_call.1} parent=1 // pred_check
      _
    $region7: #{tpu_custom_call.1} parent=1 // pred_check_branch
      %12 = sbr.rel (0) target = $region9
    $region8: #{tpu_custom_call.1} parent=1 // pred_region
      _
    $region9: #{tpu_custom_call.1} parent=1 // pred_fallthru
      _
    // Predicated region
    $region10: #{tpu_custom_call.1} parent=1 // pred_check
      _
    $region11: #{tpu_custom_call.1} parent=1 // pred_check_branch
      %14 = sbr.rel (0) target = $region13
    $region12: #{tpu_custom_call.1} parent=1 // pred_region
      _
    $region13: #{tpu_custom_call.1} parent=1 // pred_fallthru
      _
    %v15 = vld [vmem:[%s0] sm:$0xff]
    %v16 = vld [vmem:[%s0 + $0x8] sm:$0xff]
    %v17 = vld [vmem:[%s1] sm:$0xff]
    %v18 = vld [vmem:[%s1 + $0x8] sm:$0xff]
    %v19 = vld [vmem:[%s1 + $0x10] sm:$0xff]
    %v20 = vld [vmem:[%s1 + $0x18] sm:$0xff]
    %v21 = vld [vmem:[%s1 + $0x20] sm:$0xff]
    %v22 = vld [vmem:[%s1 + $0x28] sm:$0xff]
    %v23 = vld [vmem:[%s1 + $0x30] sm:$0xff]
    %v24 = vld [vmem:[%s1 + $0x38] sm:$0xff]
    %v25 = vld [vmem:[%s1 + $0x40] sm:$0xff]
    %v26 = vld [vmem:[%s1 + $0x48] sm:$0xff]
    %v27 = vld [vmem:[%s1 + $0x50] sm:$0xff]
    %v28 = vld [vmem:[%s1 + $0x58] sm:$0xff]
    %v29 = vld [vmem:[%s1 + $0x60] sm:$0xff]
    %v30 = vld [vmem:[%s1 + $0x68] sm:$0xff]
    %v31 = vld [vmem:[%s1 + $0x70] sm:$0xff]
    %v32 = vld [vmem:[%s1 + $0x78] sm:$0xff]
    %v33 = vld [vmem:[%s2] sm:$0x1]
    %v35 = vlaneseq
    %v36 = vshrl.u32 %v35, 7
    %v37 = vsub.s32 0, %v36
    %v38 = vrot.slane %v33, %v37
    %vm40 = vcmask 261120
    %v42 = vsel %vm40, %v15, 0
    %v45 = vsel %vm40, %v16, 0
    %v48 = vsel %vm40, %v17, 0
    %v51 = vsel %vm40, %v18, 0
    %v54 = vsel %vm40, %v19, 0
    %v57 = vsel %vm40, %v20, 0
    %v60 = vsel %vm40, %v21, 0
    %v63 = vsel %vm40, %v22, 0
    %v66 = vsel %vm40, %v23, 0
    %v69 = vsel %vm40, %v24, 0
    %v72 = vsel %vm40, %v25, 0
    %v75 = vsel %vm40, %v26, 0
    %v78 = vsel %vm40, %v27, 0
    %v81 = vsel %vm40, %v28, 0
    %v84 = vsel %vm40, %v29, 0
    %v87 = vsel %vm40, %v30, 0
    %v90 = vsel %vm40, %v31, 0
    %v93 = vsel %vm40, %v32, 0
    %95 = vmatprep.subr.mxu0 0.0
    %96 = vmatpush1.xpose.msra.mxu0 %v48
    %97 = vmatprep.subr.mxu0 0.0
    %98 = vmatpush1.xpose.msra.mxu0 %v51
    %99 = vmatprep.subr.mxu0 0.0
    %100 = vmatpush1.xpose.msra.mxu0 %v54
    %101 = vmatprep.subr.mxu0 0.0
    %102 = vmatpush1.xpose.msra.mxu0 %v57
    %103 = vmatprep.subr.mxu0 0.0
    %104 = vmatpush1.xpose.msra.mxu0 %v60
    %105 = vmatprep.subr.mxu0 0.0
    %106 = vmatpush1.xpose.msra.mxu0 %v63
    %107 = vmatprep.subr.mxu0 0.0
    %108 = vmatpush1.xpose.msra.mxu0 %v66
    %109 = vmatprep.subr.mxu0 0.0
    %110 = vmatpush1.xpose.msra.mxu0 %v69
    %111 = vmatprep.subr.mxu0 0.0
    %112 = vmatpush1.xpose.msra.mxu0 %v72
    %113 = vmatprep.subr.mxu0 0.0
    %114 = vmatpush1.xpose.msra.mxu0 %v75
    %115 = vmatprep.subr.mxu0 0.0
    %116 = vmatpush1.xpose.msra.mxu0 %v78
    %117 = vmatprep.subr.mxu0 0.0
    %118 = vmatpush1.xpose.msra.mxu0 %v81
    %119 = vmatprep.subr.mxu0 0.0
    %120 = vmatpush1.xpose.msra.mxu0 %v84
    %121 = vmatprep.subr.mxu0 0.0
    %122 = vmatpush1.xpose.msra.mxu0 %v87
    %123 = vmatprep.subr.mxu0 0.0
    %124 = vmatpush1.xpose.msra.mxu0 %v90
    %125 = vmatprep.subr.mxu0 0.0
    %126 = vmatpush1.xpose.msra.mxu0 %v93
    %127 = vmatprep.subr.mxu0 0.0
    %128 = vmatpush1.xpose.msra.mxu0 0.0
    %129 = vmatprep.subr.mxu0 0.0
    %130 = vmatpush1.xpose.msra.mxu0 0.0
    %131 = vmatprep.subr.mxu0 0.0
    %132 = vmatpush1.xpose.msra.mxu0 0.0
    %133 = vmatprep.subr.mxu0 0.0
    %134 = vmatpush1.xpose.msra.mxu0 0.0
    %135 = vmatprep.subr.mxu0 0.0
    %136 = vmatpush1.xpose.msra.mxu0 0.0
    %137 = vmatprep.subr.mxu0 0.0
    %138 = vmatpush1.xpose.msra.mxu0 0.0
    %139 = vmatprep.subr.mxu0 0.0
    %140 = vmatpush1.xpose.msra.mxu0 0.0
    %141 = vmatprep.subr.mxu0 0.0
    %142 = vmatpush1.xpose.msra.mxu0 0.0
    %143 = vmatprep.subr.mxu0 0.0
    %144 = vmatpush1.xpose.msra.mxu0 0.0
    %145 = vmatprep.subr.mxu0 0.0
    %146 = vmatpush1.xpose.msra.mxu0 0.0
    %147 = vmatprep.subr.mxu0 0.0
    %148 = vmatpush1.xpose.msra.mxu0 0.0
    %149 = vmatprep.subr.mxu0 0.0
    %150 = vmatpush1.xpose.msra.mxu0 0.0
    %151 = vmatprep.subr.mxu0 0.0
    %152 = vmatpush1.xpose.msra.mxu0 0.0
    %153 = vmatprep.subr.mxu0 0.0
    %154 = vmatpush1.xpose.msra.mxu0 0.0
    %155 = vmatprep.subr.mxu0 0.0
    %156 = vmatpush1.xpose.msra.mxu0 0.0
    %157 = vmatprep.subr.mxu0 0.0
    %158 = vmatpush1.xpose.msra.mxu0 0.0
    %159 = vmatprep.mubr.f32.mxu0 0.0
    %160 = vmatmul.mubr.f32.gmra.mrb[0].mxu0 %v42
    %v161 = vpop.f32.mrb[0].mxu0
    %v162 = vadd.f32 %v38, %v161
    %v163 = vpop.f32.mrb[0].mxu0
    %164 = vmatprep.mubr.f32.mxu0 0.0
    %165 = vmatmul.mubr.f32.gmra.mrb[0].mxu0 %v45
    %v166 = vpop.f32.mrb[0].mxu0
    %v167 = vadd.f32 %v38, %v166
    %v168 = vpop.f32.mrb[0].mxu0
    %169 = vdwg.mxu0
    %v170 = vand.u32 2147483647, %v162
    %v171 = vand.u32 2147483647, %v167
    %v172 = vsub.f32 0.0, %v170
    %v173 = vsub.f32 0.0, %v171
    %v174 = vmul.f32 %v172, 1.442695
    %v175 = vpow.pop %v174
    %v176 = vmul.f32 %v173, 1.442695
    %v177 = vpow.pop %v176
    %v178 = vmul.f32 %v175, %v175
    %v179 = vmul.f32 %v177, %v177
    %v180 = vmul.f32 %v175, 2.0
    %v181 = vmul.f32 %v177, 2.0
    %vm182 = vcmp.ge.f32.partialorder %v162, 0.0
    %vm183 = vcmp.ge.f32.partialorder %v167, 0.0
    %v184 = vadd.f32 %v180, 1.0
    %v185 = vadd.f32 %v181, 1.0
    %v186 = vadd.f32 %v178, %v180
    %v187 = vadd.f32 %v179, %v181
    %v188 = vsel %vm182, %v184, %v186
    %v189 = vsel %vm183, %v185, %v187
    %v190 = vmul.f32 %v178, 2.0
    %v191 = vmul.f32 %v179, 2.0
    %v192 = vadd.f32 %v184, %v190
    %v193 = vadd.f32 %v185, %v191
    %v194 = vadd.f32 %v186, 2.0
    %v195 = vadd.f32 %v187, 2.0
    %v196 = vsel %vm182, %v192, %v194
    %v197 = vsel %vm183, %v193, %v195
    %v198 = vmul.f32 %v162, %v188
    %v199 = vmul.f32 %v167, %v189
    %v200 = vrcp.pop %v196
    %v201 = vrcp.pop %v197
    %v202 = vmul.f32 %v198, %v200
    %v203 = vmul.f32 %v199, %v201
    %204 = vst [vmem:[#allocation2] sm:$0xff] %v202
    %205 = vst [vmem:[#allocation2 + $0x8] sm:$0xff] %v203
    // Predicated region
    $region14: #{tpu_custom_call.1} parent=1 // pred_check
      _
    $region15: #{tpu_custom_call.1} parent=1 // pred_check_branch
      %207 = sbr.rel (0) target = $region17
    $region16: #{tpu_custom_call.1} parent=1 // pred_region
      %s209 = ssub.s32 256, 256
      %210 = vsyncadd [#allocation3], %s209
      %s211 = sshll.u32 [#allocation2], 4
      %s212 = int_to_ptr.vmem [resolvable:$true] %s211
      %217 = dma.vmem_to_hbm [thread:$0]  %s212, 256, %s3, [#allocation3], 128, 128, 8
    $region17: #{tpu_custom_call.1} parent=1 // pred_fallthru
      _
    // Predicated region
    $region18: #{tpu_custom_call.1} parent=1 // pred_check
      _
    $region19: #{tpu_custom_call.1} parent=1 // pred_check_branch
      %219 = sbr.rel (0) target = $region21
    $region20: #{tpu_custom_call.1} parent=1 // pred_region
      %220 = dma.done [#allocation3], 256
    $region21: #{tpu_custom_call.1} parent=1 // pred_fallthru
      _
    %221 = vsyncpa [#allocation3], 1

</llo_original>
